<compile_context>
chip_gen: v6e
topology: v6e:2x2x1
jax: 0.10.0
libtpu: 0.0.40
codegen_flags: <defaults>
</compile_context>

<pallas_src>
import math
from functools import partial

import jax
import jax.numpy as jnp
from jax import lax
from jax.experimental import pallas as pl
from jax.experimental.pallas import tpu as pltpu

_LANES = 128
_VMEM_LIMIT_CACHE = None


# ----------------------------- small helpers ----------------------------------

def _round_up(x, m):
    return (x + m - 1) // m * m


def _pad_last(a, n_pad):
    if n_pad == 0:
        return a
    return jnp.pad(a, ((0, 0),) * (a.ndim - 1) + ((0, n_pad),))


def _vmem_limit():
    """Generation-aware VMEM limit: ~40 MiB on v7x (64 MiB physical),
    48 MiB on v5e/v6e (128 MiB physical)."""
    global _VMEM_LIMIT_CACHE
    if _VMEM_LIMIT_CACHE is None:
        cap = 128 * 1024 * 1024
        try:
            cap = int(pltpu.get_tpu_info().vmem_capacity_bytes)
        except Exception:
            pass
        _VMEM_LIMIT_CACHE = min(48 * 1024 * 1024, cap * 5 // 8)
    return _VMEM_LIMIT_CACHE


def _pick_tile_n(N, per_row_bytes, fixed_bytes, target=1024):
    """Row-tile size: multiple of 8, <= target, double-buffered tiles fit in half
    the VMEM limit after subtracting the resident weight/bias blocks, and small
    enough that the grid has >= ~4 steps (pipelining + both v7x TensorCores)."""
    budget = max(_vmem_limit() // 2 - fixed_bytes, 16 * per_row_bytes)
    cap = max(8, (budget // (2 * per_row_bytes)) // 8 * 8)   # x2: double-buffered blocks
    quarter = max(8, _round_up(pl.cdiv(N, 4), 8))            # aim for >= ~4 grid steps
    return max(8, (min(target, cap, quarter) // 8) * 8)


# ----------------------------- Pallas kernel ----------------------------------

def _dcn_core_kernel(cols_ref, w_ref, b_ref, o_ref):
    """DCNv2 core: out = cols @ W + b.  One full-contraction MXU matmul; the
    modulation mask is already folded into `cols` upstream."""
    acc = jnp.dot(cols_ref[...], w_ref[...], preferred_element_type=jnp.float32)
    o_ref[...] = (acc + b_ref[...]).astype(o_ref.dtype)


def pallas_dcn_core(cols, w, b):
    """cols: (N, D) bf16 (mask pre-applied); w: (D, Mpad) bf16; b: (1, Mpad) f32
    -> (N, Mpad) f32."""
    N, D = cols.shape
    Mpad = w.shape[1]
    per_row = D * cols.dtype.itemsize + Mpad * 4
    fixed = 2 * (D * Mpad * w.dtype.itemsize + Mpad * 4)      # double-buffered weights + bias
    tile_n = _pick_tile_n(N, per_row, fixed)
    n_tiles = pl.cdiv(N, tile_n)
    # No row padding: Pallas handles the partial last block; garbage rows past N
    # are independent in a row-wise matmul and are dropped on store.
    return pl.pallas_call(
        _dcn_core_kernel,
        out_shape=jax.ShapeDtypeStruct((N, Mpad), jnp.float32),
        grid_spec=pltpu.PrefetchScalarGridSpec(
            num_scalar_prefetch=0,
            grid=(n_tiles,),
            in_specs=[
                pl.BlockSpec((tile_n, D), lambda i: (i, 0)),
                pl.BlockSpec((D, Mpad), lambda i: (0, 0)),    # constant-index weight block
                pl.BlockSpec((1, Mpad), lambda i: (0, 0)),    # constant-index bias block
            ],
            out_specs=pl.BlockSpec((tile_n, Mpad), lambda i: (i, 0)),
        ),
        compiler_params=pltpu.CompilerParams(
            dimension_semantics=("parallel",),   # row tiles shard across v7x's 2 TCs
            vmem_limit_bytes=_vmem_limit(),
        ),
    )(cols, w, b)


# ----------------------------- JAX glue ----------------------------------------

def _bilinear_sample_modulate(x_nhwc, pos_y, pos_x, mask):
    """torchvision-style bilinear sampling with per-corner zero padding; the
    DCNv2 modulation mask is folded into the corner weights and the result is
    emitted directly in bf16 (single materialization of the largest tensor).

    x_nhwc: [B,H,W,C] bf16; pos_y/pos_x/mask: [B,Hout,Wout,KK] f32
    -> [B,Hout,Wout,KK,C] bf16 (already modulated).
    """
    # TODO(synk): the data-dependent 4-corner gather stays in plain JAX/XLA; a
    # fully fused Pallas gather+modulate+matmul needs the image resident in VMEM
    # plus an in-kernel gather / manual DMA of scalar-prefetched indices.
    B, H, W, C = x_nhwc.shape
    y0f = jnp.floor(pos_y)
    x0f = jnp.floor(pos_x)
    ly = pos_y - y0f
    lx = pos_x - x0f
    hy = 1.0 - ly
    hx = 1.0 - lx
    y0 = y0f.astype(jnp.int32)
    x0 = x0f.astype(jnp.int32)
    y1 = y0 + 1
    x1 = x0 + 1
    b_idx = jnp.arange(B)[:, None, None, None]

    def corner(yi, xi, wgt):
        valid = (yi >= 0) & (yi <= H - 1) & (xi >= 0) & (xi <= W - 1)
        yc = jnp.clip(yi, 0, H - 1)
        xc = jnp.clip(xi, 0, W - 1)
        vals = x_nhwc[b_idx, yc, xc].astype(jnp.float32)          # [B,Hout,Wout,KK,C]
        w = (wgt * valid.astype(wgt.dtype))[..., None]            # zero-pad folded into weight
        return vals * w

    out = (corner(y0, x0, hy * hx * mask) + corner(y0, x1, hy * lx * mask)
           + corner(y1, x0, ly * hx * mask) + corner(y1, x1, ly * lx * mask))
    return out.astype(jnp.bfloat16)


def _w_to_mat(w_oihw):
    """PyTorch conv weight [O, I, kh, kw] -> matmul weight [(kh*K+kw)*I, O]."""
    O = w_oihw.shape[0]
    return jnp.transpose(w_oihw, (2, 3, 1, 0)).reshape(-1, O)


def deformable_conv2d_forward(x_nchw, params, *, K, stride, padding, dilation):
    """DeformableConv2d.forward (v2=True, groups=1). Input/output are NCHW f32."""
    x = jnp.transpose(x_nchw, (0, 2, 3, 1)).astype(jnp.float32)   # NHWC master copy
    B, H, W, Cin = x.shape
    KK = K * K

    # --- conv_offset + conv_mask: one fused XLA conv in f32, no im2col expansion ---
    # TODO(synk): a haloed-BlockSpec Pallas conv could fuse this further; lax.conv
    # already removes the 9x im2col HBM round trip flagged by the perf review.
    w_cat = jnp.concatenate([params["w_off"], params["w_msk"]], axis=0)   # (3KK,Cin,K,K)
    b_cat = jnp.concatenate([params["b_off"], params["b_msk"]])           # (3KK,)
    om = lax.conv_general_dilated(
        x, jnp.transpose(w_cat, (2, 3, 1, 0)),                            # HWIO
        window_strides=(stride, stride),
        padding=[(padding, padding), (padding, padding)],
        rhs_dilation=(dilation, dilation),
        dimension_numbers=("NHWC", "HWIO", "NHWC"),
    ) + b_cat
    Hout, Wout = om.shape[1], om.shape[2]
    N = B * Hout * Wout

    offset = om[..., :2 * KK].reshape(B, Hout, Wout, KK, 2)   # channel 2k -> dy, 2k+1 -> dx
    dy = offset[..., 0]
    dx = offset[..., 1]
    mask = jax.nn.sigmoid(om[..., 2 * KK:])                   # sigmoid only on mask channels

    # --- sampling positions (torchvision convention), all in f32 ---
    ho = jnp.arange(Hout, dtype=jnp.float32)
    wo = jnp.arange(Wout, dtype=jnp.float32)
    ki = jnp.arange(K, dtype=jnp.float32)
    base_y = ho[:, None] * stride - padding + ki[None, :] * dilation      # [Hout,K]
    base_x = wo[:, None] * stride - padding + ki[None, :] * dilation      # [Wout,K]
    base_yy = jnp.broadcast_to(base_y[:, None, :, None], (Hout, Wout, K, K)).reshape(Hout, Wout, KK)
    base_xx = jnp.broadcast_to(base_x[None, :, None, :], (Hout, Wout, K, K)).reshape(Hout, Wout, KK)
    pos_y = base_yy[None] + dy
    pos_x = base_xx[None] + dx

    # --- bilinear gather + modulation (mask folded into corner weights, bf16 out) ---
    sampled = _bilinear_sample_modulate(x.astype(jnp.bfloat16), pos_y, pos_x, mask)
    cols = sampled.reshape(N, KK * Cin)                       # pure-metadata reshape, bf16

    # --- DCNv2 core: one full-contraction Pallas MXU matmul ---
    Cout = params["w_dcn"].shape[0]
    Mpad = _round_up(Cout, _LANES)
    w_dcn = _pad_last(_w_to_mat(params["w_dcn"]), Mpad - Cout).astype(jnp.bfloat16)  # (KK*Cin, Mpad)
    b_dcn = _pad_last(params["b_dcn"][None, :], Mpad - Cout)                          # (1, Mpad) f32

    out = pallas_dcn_core(cols, w_dcn, b_dcn)                 # (N, Mpad) f32
    out = out[:, :Cout].reshape(B, Hout, Wout, Cout)
    return jnp.transpose(out, (0, 3, 1, 2))                   # back to NCHW


# ----------------------------- parameter init ----------------------------------

def init_params(key, Cin, Cout, K):
    KK = K * K
    fan_in = Cin * KK

    def conv_init(k, out_ch):
        k1, k2 = jax.random.split(k)
        bound = 1.0 / math.sqrt(fan_in)
        w = jax.random.uniform(k1, (out_ch, Cin, K, K), jnp.float32, -bound, bound)
        b = jax.random.uniform(k2, (out_ch,), jnp.float32, -bound, bound)
        return w, b

    k_off, k_msk, k_dcn = jax.random.split(key, 3)
    w_off, b_off = conv_init(k_off, 2 * KK)   # conv_offset
    w_msk, b_msk = conv_init(k_msk, KK)       # conv_mask (pre-sigmoid)
    w_dcn, b_dcn = conv_init(k_dcn, Cout)     # DeformConv2d weight/bias
    return dict(w_off=w_off, b_off=b_off, w_msk=w_msk, b_msk=b_msk,
                w_dcn=w_dcn, b_dcn=b_dcn)


# ----------------------------- main ---------------------------------------------

if __name__ == "__main__":
    B, Cin, H, W = 2, 4, 16, 16
    Cout, K = 8, 3
    stride, padding, dilation = 1, 1, 1

    key = jax.random.PRNGKey(0)
    kx, kp = jax.random.split(key)
    x = jax.random.normal(kx, (B, Cin, H, W), jnp.float32)
    params = init_params(kp, Cin, Cout, K)

    fwd = jax.jit(deformable_conv2d_forward,
                  static_argnames=("K", "stride", "padding", "dilation"))
    out = fwd(x, params, K=K, stride=stride, padding=padding, dilation=dilation)
    out = jax.block_until_ready(out)

    assert out.shape == (B, Cout, H, W), out.shape
    assert bool(jnp.all(jnp.isfinite(out)))
    print("KERNEL_OK")
</pallas_src>

<mosaic_0001>
module attributes {stable_mosaic.version = 11 : i64} {
  func.func @_dcn_core_kernel(%arg0: i32, %arg1: memref<128x36xbf16, #tpu.memory_space<vmem>>, %arg2: memref<36x128xbf16, #tpu.memory_space<vmem>>, %arg3: memref<1x128xf32, #tpu.memory_space<vmem>>, %arg4: memref<128x128xf32, #tpu.memory_space<vmem>>) attributes {dimension_semantics = [#tpu.dimension_semantics<parallel>], iteration_bounds = array<i64: 4>, scalar_prefetch = 0 : i64, scratch_operands = 0 : i64, tpu.core_type = #tpu.core_type<tc>, window_params = [{transform_indices = @transform_0, window_bounds = array<i64: 128, 36>}, {pipeline_mode = #tpu.pipeline_mode<synchronous>, transform_indices = @transform_1, window_bounds = array<i64: 36, 128>}, {pipeline_mode = #tpu.pipeline_mode<synchronous>, transform_indices = @transform_2, window_bounds = array<i64: 1, 128>}, {transform_indices = @transform_3, window_bounds = array<i64: 128, 128>}]} {
    %c0 = arith.constant 0 : index
    %c0_0 = arith.constant 0 : index
    %0 = vector.load %arg1[%c0, %c0_0] : memref<128x36xbf16, #tpu.memory_space<vmem>>, vector<128x36xbf16>
    %c0_1 = arith.constant 0 : index
    %c0_2 = arith.constant 0 : index
    %1 = vector.load %arg2[%c0_1, %c0_2] : memref<36x128xbf16, #tpu.memory_space<vmem>>, vector<36x128xbf16>
    %cst = arith.constant dense<0.000000e+00> : vector<128x128xf32>
    %2 = tpu.matmul %0, %1, %cst {dimension_numbers = #tpu.dot_dimension_numbers<[1], [0], [0], [1], [0, 0, 1, 1], [], []>} : vector<128x36xbf16>, vector<36x128xbf16>, vector<128x128xf32> -> vector<128x128xf32>
    %c0_3 = arith.constant 0 : index
    %c0_4 = arith.constant 0 : index
    %3 = vector.load %arg3[%c0_3, %c0_4] : memref<1x128xf32, #tpu.memory_space<vmem>>, vector<1x128xf32>
    %4 = vector.broadcast %3 : vector<1x128xf32> to vector<128x128xf32>
    %5 = arith.addf %2, %4 : vector<128x128xf32>
    %c0_5 = arith.constant 0 : index
    %c0_6 = arith.constant 0 : index
    %6 = vector.load %arg4[%c0_5, %c0_6] : memref<128x128xf32, #tpu.memory_space<vmem>>, vector<128x128xf32>
    tpu.vector_store %arg4[%c0_5, %c0_6], %5 {strides = array<i32>} : memref<128x128xf32, #tpu.memory_space<vmem>>, vector<128x128xf32>,
    return
  }
  func.func @transform_0(%arg0: i32) -> (i32, i32) {
    %c0_i32 = arith.constant 0 : i32
    %c0_i32_0 = arith.constant 0 : i32
    return %arg0, %c0_i32 : i32, i32
  }
  func.func @transform_1(%arg0: i32) -> (i32, i32) {
    %c0_i32 = arith.constant 0 : i32
    %c0_i32_0 = arith.constant 0 : i32
    %c0_i32_1 = arith.constant 0 : i32
    return %c0_i32, %c0_i32_0 : i32, i32
  }
  func.func @transform_2(%arg0: i32) -> (i32, i32) {
    %c0_i32 = arith.constant 0 : i32
    %c0_i32_0 = arith.constant 0 : i32
    %c0_i32_1 = arith.constant 0 : i32
    return %c0_i32, %c0_i32_0 : i32, i32
  }
  func.func @transform_3(%arg0: i32) -> (i32, i32) {
    %c0_i32 = arith.constant 0 : i32
    %c0_i32_0 = arith.constant 0 : i32
    return %arg0, %c0_i32 : i32, i32
  }
}

</mosaic_0001>

<llo_original>
// kernel: deformable_conv2d_forward.1
$region0: #{deformable_conv2d_forward.1}
  #allocation0 [shape = 'u32[]', space=smem, size = 0x4, offset = 0x4, fixed_abs, tag = 'smem constant byte address 0x4 - core index']
  #allocation1 [shape = 'u32[144,128]{1,0:T(1,128)}', space=vmem, size = 0x12000, scoped, tag = 'internal scratch']
  %s0 = inlined_call_operand.vmem [shape: bf16[512,36], index: 0, kind: input, shape index: {}]
  %s1 = inlined_call_operand.vmem [shape: bf16[36,128], index: 1, kind: input, shape index: {}]
  %s2 = inlined_call_operand.vmem [shape: f32[1,128], index: 2, kind: input, shape index: {}]
  %s3 = inlined_call_operand.vmem [shape: f32[512,128], index: 3, kind: output, shape index: {}]
  %s4 = sld [smem:[#allocation0]]
  $region45: #{deformable_conv2d_forward.1} parent=0
    _
  %s6 = ssub.s32 1, %s4
  %s7 = scalar_select 0, %s6, %s4
  loop: start=0, step=1, limit=6
  $region2: #{deformable_conv2d_forward.1} parent=0 // loop_pre_header
    _
  $region3: #{deformable_conv2d_forward.1} parent=0 // loop_header
    %s9 = sphi 0, %s13
    %p10 = scmp.ge.s32.totalorder %s9, 6
    %s19 = sphi 0, %s21
    %s22 = sphi 0, %s19
    %s23 = sphi 0, %s22
    %s39 = sphi 0, %s23
    %s43 = sphi 0, %s43
    %s45 = sphi 0, %s43
    %s46 = sphi 0, %s45
    %s60 = sphi 0, %s46
    %s64 = sphi 0, %s64
    %s66 = sphi 0, %s64
    %s67 = sphi 0, %s66
    %s81 = sphi 0, %s67
    %s87 = sphi 0, %s89
    %s90 = sphi 0, %s87
    %s91 = sphi 0, %s90
    %s107 = sphi 0, %s91
  $region4: #{deformable_conv2d_forward.1} parent=0 // loop_header_branch
    %12 = sbr.rel (%p10) target = $region8
  $region5: #{deformable_conv2d_forward.1} parent=0 // loop_body
    %s14 = ssub.s32 %s9, 1
    %s15 = ssub.s32 %s9, 2
    %s16 = sadd.s32 %s9, 1
    %s17 = ssub.s32 %s9, %s16
    %p18 = scmp.eq.s32.totalorder %s17, 0
    %s20 = sadd.s32 %s19, 1
    %s21 = scalar_select %p18, %s19, %s20
    %p24 = pneg %p18
    %p25 = scmp.eq.s32.totalorder %s9, 3
    %p26 = por %p24, %p25
    %p27 = scmp.ne.s32.totalorder %s19, %s22
    %p28 = scmp.eq.s32.totalorder %s9, 0
    %p29 = por %p27, %p28
    %p30 = scmp.ne.s32.totalorder %s19, %s22
    %p31 = scmp.eq.s32.totalorder %s14, 3
    %p32 = por %p30, %p31
    %p33 = scmp.ne.s32.totalorder %s22, %s23
    %p34 = scmp.eq.s32.totalorder %s14, 0
    %p35 = por %p33, %p34
    %p36 = scmp.ne.s32.totalorder %s22, %s23
    %p37 = scmp.eq.s32.totalorder %s15, 3
    %p38 = por %p36, %p37
    %p40 = scmp.ne.s32.totalorder %s23, %s39
    %p41 = scmp.eq.s32.totalorder %s15, 0
    %p42 = por %p40, %p41
    %s44 = sadd.s32 %s43, 1
    %p47 = scmp.eq.s32.totalorder %s9, 3
    %p48 = scmp.ne.s32.totalorder %s43, %s45
    %p49 = scmp.eq.s32.totalorder %s9, 0
    %p50 = por %p48, %p49
    %p51 = scmp.ne.s32.totalorder %s43, %s45
    %p52 = scmp.eq.s32.totalorder %s14, 3
    %p53 = por %p51, %p52
    %p54 = scmp.ne.s32.totalorder %s45, %s46
    %p55 = scmp.eq.s32.totalorder %s14, 0
    %p56 = por %p54, %p55
    %p57 = scmp.ne.s32.totalorder %s45, %s46
    %p58 = scmp.eq.s32.totalorder %s15, 3
    %p59 = por %p57, %p58
    %p61 = scmp.ne.s32.totalorder %s46, %s60
    %p62 = scmp.eq.s32.totalorder %s15, 0
    %p63 = por %p61, %p62
    %s65 = sadd.s32 %s64, 1
    %p68 = scmp.eq.s32.totalorder %s9, 3
    %p69 = scmp.ne.s32.totalorder %s64, %s66
    %p70 = scmp.eq.s32.totalorder %s9, 0
    %p71 = por %p69, %p70
    %p72 = scmp.ne.s32.totalorder %s64, %s66
    %p73 = scmp.eq.s32.totalorder %s14, 3
    %p74 = por %p72, %p73
    %p75 = scmp.ne.s32.totalorder %s66, %s67
    %p76 = scmp.eq.s32.totalorder %s14, 0
    %p77 = por %p75, %p76
    %p78 = scmp.ne.s32.totalorder %s66, %s67
    %p79 = scmp.eq.s32.totalorder %s15, 3
    %p80 = por %p78, %p79
    %p82 = scmp.ne.s32.totalorder %s67, %s81
    %p83 = scmp.eq.s32.totalorder %s15, 0
    %p84 = por %p82, %p83
    %s85 = ssub.s32 %s9, %s16
    %p86 = scmp.eq.s32.totalorder %s85, 0
    %s88 = sadd.s32 %s87, 1
    %s89 = scalar_select %p86, %s87, %s88
    %p92 = pneg %p86
    %p93 = scmp.eq.s32.totalorder %s9, 3
    %p94 = por %p92, %p93
    %p95 = scmp.ne.s32.totalorder %s87, %s90
    %p96 = scmp.eq.s32.totalorder %s9, 0
    %p97 = por %p95, %p96
    %p98 = scmp.ne.s32.totalorder %s87, %s90
    %p99 = scmp.eq.s32.totalorder %s14, 3
    %p100 = por %p98, %p99
    %p101 = scmp.ne.s32.totalorder %s90, %s91
    %p102 = scmp.eq.s32.totalorder %s14, 0
    %p103 = por %p101, %p102
    %p104 = scmp.ne.s32.totalorder %s90, %s91
    %p105 = scmp.eq.s32.totalorder %s15, 3
    %p106 = por %p104, %p105
    %p108 = scmp.ne.s32.totalorder %s91, %s107
    %p109 = scmp.eq.s32.totalorder %s15, 0
    %p110 = por %p108, %p109
    %p111 = scmp.le.s32.totalorder 1, %s9
    %p112 = scmp.lt.s32.totalorder %s9, 5
    %p113 = pnand %p111, %p112
    %p114 = pneg %p113
    // Predicated region
    $region9: #{deformable_conv2d_forward.1} parent=5 // pred_check
      _
    $region10: #{deformable_conv2d_forward.1} parent=5 // pred_check_branch
      %116 = sbr.rel (%p113) target = $region12
    $region11: #{deformable_conv2d_forward.1} parent=5 // pred_region
      %s117 = ssub.s32 %s9, 1
      // Predicated region
      $region13: #{deformable_conv2d_forward.1} parent=11 // pred_check
        %p118 = pneg %p56
      $region14: #{deformable_conv2d_forward.1} parent=11 // pred_check_branch
        %120 = sbr.rel (%p118) target = $region16
      $region15: #{deformable_conv2d_forward.1} parent=11 // pred_region
        _
      $region16: #{deformable_conv2d_forward.1} parent=11 // pred_fallthru
        _
      // Predicated region
      $region17: #{deformable_conv2d_forward.1} parent=11 // pred_check
        %p121 = pneg %p77
      $region18: #{deformable_conv2d_forward.1} parent=11 // pred_check_branch
        %123 = sbr.rel (%p121) target = $region20
      $region19: #{deformable_conv2d_forward.1} parent=11 // pred_region
        _
      $region20: #{deformable_conv2d_forward.1} parent=11 // pred_fallthru
        _
    $region12: #{deformable_conv2d_forward.1} parent=5 // pred_fallthru
      _
    %p124 = scmp.lt.s32.totalorder %s9, 4
    // Predicated region
    $region21: #{deformable_conv2d_forward.1} parent=5 // pred_check
      %p125 = pneg %p124
    $region22: #{deformable_conv2d_forward.1} parent=5 // pred_check_branch
      %127 = sbr.rel (%p125) target = $region24
    $region23: #{deformable_conv2d_forward.1} parent=5 // pred_region
      // Predicated region
      $region25: #{deformable_conv2d_forward.1} parent=23 // pred_check
        %p128 = pneg %p29
      $region26: #{deformable_conv2d_forward.1} parent=23 // pred_check_branch
        %130 = sbr.rel (%p128) target = $region28
      $region27: #{deformable_conv2d_forward.1} parent=23 // pred_region
        %s131 = smul.u32 16, %s9
        %p132 = scmp.lt.s32.totalorder %s131, 63
        %s133 = scalar_select %p132, %s131, 63
        %s134 = smul.addr %s133, 4
        %s135 = scalar_lea.vmem %s0, %s134
        %s136 = smul.u32 16, %s9
      $region28: #{deformable_conv2d_forward.1} parent=23 // pred_fallthru
        _
    $region24: #{deformable_conv2d_forward.1} parent=5 // pred_fallthru
      _
    %p137 = scmp.le.s32.totalorder 1, %s9
    %p138 = scmp.lt.s32.totalorder %s9, 5
    %p139 = pnand %p137, %p138
    %p140 = pneg %p139
    // Predicated region
    $region29: #{deformable_conv2d_forward.1} parent=5 // pred_check
      _
    $region30: #{deformable_conv2d_forward.1} parent=5 // pred_check_branch
      %142 = sbr.rel (%p139) target = $region32
    $region31: #{deformable_conv2d_forward.1} parent=5 // pred_region
      %s143 = ssub.s32 %s9, 1
      %s144 = smul.u32 16, %s14
      %p145 = scmp.lt.s32.totalorder %s144, 63
      %s146 = scalar_select %p145, %s144, 63
      %s147 = smul.addr %s146, 4
      %s148 = scalar_lea.vmem %s0, %s147
      %p149 = pneg %p35
      %p150 = pneg %p32
      %p151 = pneg %p56
      %p152 = pneg %p53
      %p153 = pneg %p77
      %p154 = pneg %p74
      %p155 = pneg %p103
      %p156 = pneg %p100
      %s157 = smul.u32 16, %s14
      %p158 = scmp.lt.s32.totalorder %s157, 63
      %s159 = scalar_select %p158, %s157, 63
      %s160 = smul.addr %s159, 8
      %s161 = scalar_lea.vmem %s3, %s160
      %s162 = smul.u32 16, %s14
      %p163 = scmp.lt.s32.totalorder %s162, 63
      %s164 = scalar_select %p163, %s162, 63
      %s165 = smul.addr %s164, 4
      %s166 = scalar_lea.vmem %s0, %s165
      %s167 = smul.u32 16, %s14
      %s168 = smul.u32 16, %s14
      %p169 = scmp.lt.s32.totalorder %s168, 63
      %s170 = scalar_select %p169, %s168, 63
      %s171 = smul.addr %s170, 8
      %s172 = scalar_lea.vmem %s3, %s171
      %s173 = smul.u32 16, %s14
      %v175 = vld [vmem:[%s166] sm:$0xf]
      %v176 = vld [vmem:[%s166 + $0x4] sm:$0xf]
      %v177 = vld [vmem:[%s166 + $0x8] sm:$0xf]
      %v178 = vld [vmem:[%s166 + $0xc] sm:$0xf]
      %v179 = vld [vmem:[%s166 + $0x10] sm:$0xf]
      %v180 = vld [vmem:[%s166 + $0x14] sm:$0xf]
      %v181 = vld [vmem:[%s166 + $0x18] sm:$0xf]
      %v182 = vld [vmem:[%s166 + $0x1c] sm:$0xf]
      %v183 = vld [vmem:[%s166 + $0x20] sm:$0xf]
      %v184 = vld [vmem:[%s166 + $0x24] sm:$0xf]
      %v185 = vld [vmem:[%s166 + $0x28] sm:$0xf]
      %v186 = vld [vmem:[%s166 + $0x2c] sm:$0xf]
      %v187 = vld [vmem:[%s166 + $0x30] sm:$0xf]
      %v188 = vld [vmem:[%s166 + $0x34] sm:$0xf]
      %v189 = vld [vmem:[%s166 + $0x38] sm:$0xf]
      %v190 = vld [vmem:[%s166 + $0x3c] sm:$0xf]
      %v191 = vld [vmem:[%s1] sm:$0xf]
      %v192 = vld [vmem:[%s1 + $0x4] sm:$0xf]
      %v193 = vld [vmem:[%s1 + $0x8] sm:$0xf]
      %v194 = vld [vmem:[%s1 + $0xc] sm:$0xf]
      %v195 = vld [vmem:[%s1 + $0x10] sm:$0x3]
      %v196 = vld [vmem:[%s2] sm:$0x1]
      %v198 = vlaneseq
      %v199 = vshrl.u32 %v198, 7
      %v200 = vsub.s32 0, %v199
      %v201 = vrot.slane %v196, %v200
      %v219 = vunpack.c.l.b16 %v175
      %v220 = vunpack.c.l.b16 %v176
      %v221 = vunpack.c.l.b16 %v177
      %v222 = vunpack.c.l.b16 %v178
      %v223 = vunpack.c.l.b16 %v179
      %v224 = vunpack.c.l.b16 %v180
      %v225 = vunpack.c.l.b16 %v181
      %v226 = vunpack.c.l.b16 %v182
      %v227 = vunpack.c.l.b16 %v183
      %v228 = vunpack.c.l.b16 %v184
      %v229 = vunpack.c.l.b16 %v185
      %v230 = vunpack.c.l.b16 %v186
      %v231 = vunpack.c.l.b16 %v187
      %v232 = vunpack.c.l.b16 %v188
      %v233 = vunpack.c.l.b16 %v189
      %v234 = vunpack.c.l.b16 %v190
      %v235 = vpack.c.b16 %v220, %v219
      %v236 = vpack.c.b16 %v222, %v221
      %v237 = vpack.c.b16 %v224, %v223
      %v238 = vpack.c.b16 %v226, %v225
      %v239 = vpack.c.b16 %v228, %v227
      %v240 = vpack.c.b16 %v230, %v229
      %v241 = vpack.c.b16 %v232, %v231
      %v242 = vpack.c.b16 %v234, %v233
      %v248 = vunpack.c.l.b16 %v191
      %v249 = vunpack.c.l.b16 %v192
      %v250 = vunpack.c.l.b16 %v193
      %v251 = vunpack.c.l.b16 %v194
      %v252 = vunpack.c.l.b16 %v195
      %v253 = vpack.c.b16 %v249, %v248
      %v254 = vpack.c.b16 %v251, %v250
      %v255 = vpack.c.b16 %v252, %v252
      %vm258 = vcmask 293888
      %v260 = vsel %vm258, %v235, 0
      %v263 = vsel %vm258, %v236, 0
      %v266 = vsel %vm258, %v237, 0
      %v269 = vsel %vm258, %v238, 0
      %v272 = vsel %vm258, %v239, 0
      %v275 = vsel %vm258, %v240, 0
      %v278 = vsel %vm258, %v241, 0
      %v281 = vsel %vm258, %v242, 0
      %vm283 = vcmask 1041408
      %v285 = vsel %vm283, %v255, 0
      %287 = vmatprep.subr.bf16.mxu0 0
      %288 = vmatpush1.bf16.msra.mxu0 0
      %289 = vmatprep.subr.bf16.mxu0 0
      %290 = vmatpush1.bf16.msra.mxu0 0
      %291 = vmatprep.subr.bf16.mxu0 0
      %292 = vmatpush1.bf16.msra.mxu0 0
      %293 = vmatprep.subr.bf16.mxu0 0
      %294 = vmatpush1.bf16.msra.mxu0 0
      %295 = vmatprep.subr.bf16.mxu0 0
      %296 = vmatpush1.bf16.msra.mxu0 0
      %297 = vmatprep.subr.bf16.mxu0 0
      %298 = vmatpush1.bf16.msra.mxu0 %v285
      %299 = vmatprep.subr.bf16.mxu0 0
      %300 = vmatpush1.bf16.msra.mxu0 %v254
      %301 = vmatprep.subr.bf16.mxu0 0
      %302 = vmatpush1.bf16.msra.mxu0 %v253
      %303 = vmatprep.subr.bf16.mxu0 0
      %304 = vmatpush2.bf16.msra.mxu0 0
      %305 = vmatprep.subr.bf16.mxu0 0
      %306 = vmatpush2.bf16.msra.mxu0 0
      %307 = vmatprep.subr.bf16.mxu0 0
      %308 = vmatpush2.bf16.msra.mxu0 0
      %309 = vmatprep.subr.bf16.mxu0 0
      %310 = vmatpush2.bf16.msra.mxu0 0
      %311 = vmatprep.subr.bf16.mxu0 0
      %312 = vmatpush2.bf16.msra.mxu0 0
      %313 = vmatprep.subr.bf16.mxu0 0
      %314 = vmatpush2.bf16.msra.mxu0 0
      %315 = vmatprep.subr.bf16.mxu0 0
      %316 = vmatpush2.bf16.msra.mxu0 0
      %317 = vmatprep.subr.bf16.mxu0 0
      %318 = vmatpush2.bf16.msra.mxu0 0
      %319 = vmatprep.mubr.bf16.mxu0 0
      %320 = vmatmul.mubr.bf16.gmra.mxu0 %v260
      %v321 = vpop.f32.mrf.mxu0
      %v322 = vadd.f32 %v201, %v321
      %v323 = vpop.f32.mrf.mxu0
      %v324 = vpop.f32.mrf.mxu0
      %v325 = vadd.f32 %v201, %v324
      %v326 = vpop.f32.mrf.mxu0
      %327 = vmatprep.mubr.bf16.mxu0 0
      %328 = vmatmul.mubr.bf16.gmra.mxu0 %v263
      %v329 = vpop.f32.mrf.mxu0
      %v330 = vadd.f32 %v201, %v329
      %v331 = vpop.f32.mrf.mxu0
      %v332 = vpop.f32.mrf.mxu0
      %v333 = vadd.f32 %v201, %v332
      %v334 = vpop.f32.mrf.mxu0
      %335 = vmatprep.mubr.bf16.mxu0 0
      %336 = vmatmul.mubr.bf16.gmra.mxu0 %v266
      %v337 = vpop.f32.mrf.mxu0
      %v338 = vadd.f32 %v201, %v337
      %v339 = vpop.f32.mrf.mxu0
      %v340 = vpop.f32.mrf.mxu0
      %v341 = vadd.f32 %v201, %v340
      %v342 = vpop.f32.mrf.mxu0
      %343 = vmatprep.mubr.bf16.mxu0 0
      %344 = vmatmul.mubr.bf16.gmra.mxu0 %v269
      %v345 = vpop.f32.mrf.mxu0
      %v346 = vadd.f32 %v201, %v345
      %v347 = vpop.f32.mrf.mxu0
      %v348 = vpop.f32.mrf.mxu0
      %v349 = vadd.f32 %v201, %v348
      %v350 = vpop.f32.mrf.mxu0
      %351 = vmatprep.mubr.bf16.mxu0 0
      %352 = vmatmul.mubr.bf16.gmra.mxu0 %v272
      %v353 = vpop.f32.mrf.mxu0
      %v354 = vadd.f32 %v201, %v353
      %v355 = vpop.f32.mrf.mxu0
      %v356 = vpop.f32.mrf.mxu0
      %v357 = vadd.f32 %v201, %v356
      %v358 = vpop.f32.mrf.mxu0
      %359 = vmatprep.mubr.bf16.mxu0 0
      %360 = vmatmul.mubr.bf16.gmra.mxu0 %v275
      %v361 = vpop.f32.mrf.mxu0
      %v362 = vadd.f32 %v201, %v361
      %v363 = vpop.f32.mrf.mxu0
      %v364 = vpop.f32.mrf.mxu0
      %v365 = vadd.f32 %v201, %v364
      %v366 = vpop.f32.mrf.mxu0
      %367 = vmatprep.mubr.bf16.mxu0 0
      %368 = vmatmul.mubr.bf16.gmra.mxu0 %v278
      %v369 = vpop.f32.mrf.mxu0
      %v370 = vadd.f32 %v201, %v369
      %v371 = vpop.f32.mrf.mxu0
      %v372 = vpop.f32.mrf.mxu0
      %v373 = vadd.f32 %v201, %v372
      %v374 = vpop.f32.mrf.mxu0
      %375 = vmatprep.mubr.bf16.mxu0 0
      %376 = vmatmul.mubr.bf16.gmra.mxu0 %v281
      %v377 = vpop.f32.mrf.mxu0
      %v378 = vadd.f32 %v201, %v377
      %v379 = vpop.f32.mrf.mxu0
      %v380 = vpop.f32.mrf.mxu0
      %v381 = vadd.f32 %v201, %v380
      %v382 = vpop.f32.mrf.mxu0
      %383 = vdwg.mxu0
      %384 = vst [vmem:[%s172] sm:$0xff] %v322
      %385 = vst [vmem:[%s172 + $0x8] sm:$0xff] %v325
      %386 = vst [vmem:[%s172 + $0x10] sm:$0xff] %v330
      %387 = vst [vmem:[%s172 + $0x18] sm:$0xff] %v333
      %388 = vst [vmem:[%s172 + $0x20] sm:$0xff] %v338
      %389 = vst [vmem:[%s172 + $0x28] sm:$0xff] %v341
      %390 = vst [vmem:[%s172 + $0x30] sm:$0xff] %v346
      %391 = vst [vmem:[%s172 + $0x38] sm:$0xff] %v349
      %392 = vst [vmem:[%s172 + $0x40] sm:$0xff] %v354
      %393 = vst [vmem:[%s172 + $0x48] sm:$0xff] %v357
      %394 = vst [vmem:[%s172 + $0x50] sm:$0xff] %v362
      %395 = vst [vmem:[%s172 + $0x58] sm:$0xff] %v365
      %396 = vst [vmem:[%s172 + $0x60] sm:$0xff] %v370
      %397 = vst [vmem:[%s172 + $0x68] sm:$0xff] %v373
      %398 = vst [vmem:[%s172 + $0x70] sm:$0xff] %v378
      %399 = vst [vmem:[%s172 + $0x78] sm:$0xff] %v381
      %s400 = smul.u32 16, %s14
      %p401 = scmp.lt.s32.totalorder %s400, 63
      %s402 = scalar_select %p401, %s400, 63
      %s403 = smul.addr %s402, 8
      %s404 = scalar_lea.vmem %s3, %s403
      // Predicated region
      $region33: #{deformable_conv2d_forward.1} parent=31 // pred_check
        %p405 = pneg %p100
      $region34: #{deformable_conv2d_forward.1} parent=31 // pred_check_branch
        %407 = sbr.rel (%p405) target = $region36
      $region35: #{deformable_conv2d_forward.1} parent=31 // pred_region
        %s408 = smul.u32 16, %s14
      $region36: #{deformable_conv2d_forward.1} parent=31 // pred_fallthru
        _
    $region32: #{deformable_conv2d_forward.1} parent=5 // pred_fallthru
      _
    %p409 = scmp.le.s32.totalorder 2, %s9
    // Predicated region
    $region37: #{deformable_conv2d_forward.1} parent=5 // pred_check
      %p410 = pneg %p409
    $region38: #{deformable_conv2d_forward.1} parent=5 // pred_check_branch
      %412 = sbr.rel (%p410) target = $region40
    $region39: #{deformable_conv2d_forward.1} parent=5 // pred_region
      %s413 = ssub.s32 %s9, 2
      // Predicated region
      $region41: #{deformable_conv2d_forward.1} parent=39 // pred_check
        %p414 = pneg %p106
      $region42: #{deformable_conv2d_forward.1} parent=39 // pred_check_branch
        %416 = sbr.rel (%p414) target = $region44
      $region43: #{deformable_conv2d_forward.1} parent=39 // pred_region
        %s417 = smul.u32 16, %s15
        %p418 = scmp.lt.s32.totalorder %s417, 63
        %s419 = scalar_select %p418, %s417, 63
        %s420 = smul.addr %s419, 8
        %s421 = scalar_lea.vmem %s3, %s420
      $region44: #{deformable_conv2d_forward.1} parent=39 // pred_fallthru
        _
    $region40: #{deformable_conv2d_forward.1} parent=5 // pred_fallthru
      _
  $region6: #{deformable_conv2d_forward.1} parent=0 // loop_footer
    %s13 = sadd.s32 1, %s9
  $region7: #{deformable_conv2d_forward.1} parent=0 // loop_footer_branch
    %8 = sbr.rel target = $region3
  $region8: #{deformable_conv2d_forward.1} parent=0 // loop_exit
    _

</llo_original>
